<compile_context>
chip_gen: v7x
topology: tpu7x:2x2x1
jax: 0.10.0
libtpu: 0.0.40
codegen_flags: <defaults>
</compile_context>

<pallas_src>
import functools

import jax
import jax.numpy as jnp
from jax import lax
from jax.experimental import pallas as pl
from jax.experimental.pallas import tpu as pltpu


# ----------------------------------------------------------------------------
# Tiling helper
# ----------------------------------------------------------------------------
def _divisor_tile(n, cap, mult):
    """Largest d <= cap with n % d == 0 and (d % mult == 0 or d == n)."""
    for d in range(min(n, cap), 0, -1):
        if n % d == 0 and (d % mult == 0 or d == n):
            return d
    return n


# ----------------------------------------------------------------------------
# Kernel 1: pairwise squared distances (KNN graph construction hot path)
# ----------------------------------------------------------------------------
def _sqdist_kernel(x_ref, y_ref, ysq_ref, o_ref):
    x = x_ref[0]                                                      # (TN, 3)
    y = y_ref[0]                                                      # (M, 3)
    xx = jnp.sum(x * x, axis=-1, keepdims=True)                       # (TN, 1)
    xy = lax.dot_general(x, y, (((1,), (1,)), ((), ())),
                         preferred_element_type=jnp.float32)          # (TN, M)
    o_ref[0] = xx + ysq_ref[0] - 2.0 * xy                             # yy hoisted


def pairwise_sqdist(x, y):
    B, N, _ = x.shape
    M = y.shape[1]
    # sum(y*y) computed once per batch outside the tile loop (tiny (B,1,M)).
    ysq = jnp.sum(y * y, axis=-1, keepdims=True).transpose(0, 2, 1)
    tn = _divisor_tile(N, 512, 8)
    return pl.pallas_call(
        _sqdist_kernel,
        out_shape=jax.ShapeDtypeStruct((B, N, M), jnp.float32),
        grid=(B, N // tn),
        in_specs=[pl.BlockSpec((1, tn, 3), lambda b, t: (b, t, 0)),
                  pl.BlockSpec((1, M, 3), lambda b, t: (b, 0, 0)),    # resident / b
                  pl.BlockSpec((1, 1, M), lambda b, t: (b, 0, 0))],
        out_specs=pl.BlockSpec((1, tn, M), lambda b, t: (b, t, 0)),
        compiler_params=pltpu.CompilerParams(
            dimension_semantics=("parallel", "parallel"),
            vmem_limit_bytes=48 * 1024 * 1024),
    )(x, y, ysq)


# ----------------------------------------------------------------------------
# Kernel 2: fully fused SetConv
#   = in-kernel neighbor gather (one-hot MXU matmul)
#     -> 3x [Linear -> InstanceNorm1d(affine) -> LeakyReLU(0.1)]
#     -> max over the K neighbors of every point.
#   One pallas_call per layer, grid over batch; all N*K x C activations stay in
#   a bf16 VMEM scratch (never hit HBM); instance-norm stats accumulated in f32.
# ----------------------------------------------------------------------------
def _fused_setconv_kernel(sig_ref, edge_ref, idx_ref,
                          w1a_ref, w1b_ref, b1_ref, g1_ref, be1_ref,
                          w2_ref, b2_ref, g2_ref, be2_ref,
                          w3_ref, b3_ref, g3_ref, be3_ref,
                          o_ref, zbuf,
                          *, n_points, k_neigh, c_out, tr1, tr2, trp):
    nk = n_points * k_neigh
    inv_nk = 1.0 / nk
    zero_stats = jnp.zeros((1, c_out), jnp.float32)

    # Per-point half of fc1, hoisted out of the N*K row loop:
    #   gather(sig) @ W1a == gather(sig @ W1a)   (one-hot gather is exact).
    sig = sig_ref[0]                                                  # (N, Cin) bf16
    sig_feat = jnp.dot(sig, w1a_ref[...],
                       preferred_element_type=jnp.float32).astype(jnp.bfloat16)
    w1b = w1b_ref[...]                                                # (3, Cout) bf16
    b1 = b1_ref[...]                                                  # (1, Cout) f32

    # ---- sweep 1: in-kernel gather (one-hot matmul) + fc1 + stats ----------
    col_ids = lax.broadcasted_iota(jnp.int32, (tr1, n_points), 1)

    def sweep1(t, carry):
        ssum, ssq = carry
        r0 = pl.multiple_of(t * tr1, tr1)
        idx = idx_ref[0, pl.ds(r0, tr1), :]                           # (tr1, 1) int32
        onehot = jnp.where(idx == col_ids, 1.0, 0.0).astype(jnp.bfloat16)
        e = edge_ref[0, pl.ds(r0, tr1), :]                            # (tr1, 3) bf16
        z = (jnp.dot(onehot, sig_feat, preferred_element_type=jnp.float32)
             + jnp.dot(e, w1b, preferred_element_type=jnp.float32) + b1)
        zbuf[pl.ds(r0, tr1), :] = z.astype(jnp.bfloat16)
        return (ssum + jnp.sum(z, axis=0, keepdims=True),
                ssq + jnp.sum(z * z, axis=0, keepdims=True))

    stats = lax.fori_loop(0, nk // tr1, sweep1, (zero_stats, zero_stats))

    # NOTE(synk): single-pass E[x^2]-mean^2 variance (clamped) in f32; see
    # review correctness concern -- matches the previous validated version.
    def norm_params(ssum, ssq, g_ref, be_ref):
        mean = ssum * inv_nk
        var = jnp.maximum(ssq * inv_nk - mean * mean, 0.0)
        scale = lax.rsqrt(var + 1e-5) * g_ref[...]
        return mean, scale, be_ref[...]

    # ---- sweeps 2 & 3: InstanceNorm + LeakyReLU(0.1) + next Linear ---------
    def mid_sweep(stats_in, g_ref, be_ref, w_ref, b_ref):
        mean, scale, shift = norm_params(stats_in[0], stats_in[1], g_ref, be_ref)
        w = w_ref[...]
        b = b_ref[...]

        def body(t, carry):
            ssum, ssq = carry
            r0 = pl.multiple_of(t * tr2, tr2)
            z = zbuf[pl.ds(r0, tr2), :].astype(jnp.float32)
            h = (z - mean) * scale + shift
            h = jnp.maximum(h, 0.1 * h)                               # LeakyReLU(0.1)
            z2 = jnp.dot(h.astype(jnp.bfloat16), w,
                         preferred_element_type=jnp.float32) + b
            zbuf[pl.ds(r0, tr2), :] = z2.astype(jnp.bfloat16)
            return (ssum + jnp.sum(z2, axis=0, keepdims=True),
                    ssq + jnp.sum(z2 * z2, axis=0, keepdims=True))

        return lax.fori_loop(0, nk // tr2, body, (zero_stats, zero_stats))

    stats = mid_sweep(stats, g1_ref, be1_ref, w2_ref, b2_ref)
    stats = mid_sweep(stats, g2_ref, be2_ref, w3_ref, b3_ref)

    # ---- sweep 4: final InstanceNorm + LeakyReLU + max over K neighbors ----
    mean, scale, shift = norm_params(stats[0], stats[1], g3_ref, be3_ref)

    def pool_sweep(t, carry):
        rows = trp * k_neigh
        r0 = pl.multiple_of(t * rows, rows)
        p0 = pl.multiple_of(t * trp, trp)
        z = zbuf[pl.ds(r0, rows), :].astype(jnp.float32)
        h = (z - mean) * scale + shift
        h = jnp.maximum(h, 0.1 * h)
        o_ref[0, pl.ds(p0, trp), :] = jnp.max(
            h.reshape(trp, k_neigh, c_out), axis=1)
        return carry

    lax.fori_loop(0, n_points // trp, pool_sweep, 0)


def fused_setconv(signal, idx_flat, edge_flat, params):
    """signal (B,N,Cin) f32, idx_flat (B,N*K,1) int32, edge_flat (B,N*K,3) bf16."""
    B, N, Cin = signal.shape
    NK = idx_flat.shape[1]
    K = NK // N
    Cout = params["w1a"].shape[1]
    tr1 = _divisor_tile(NK, 256, 8)       # gather sweep (bounds one-hot temps)
    tr2 = _divisor_tile(NK, 2048, 8)      # norm/linear sweeps
    trp = _divisor_tile(N, 128, 8)        # points per max-pool tile

    kernel = functools.partial(_fused_setconv_kernel, n_points=N, k_neigh=K,
                               c_out=Cout, tr1=tr1, tr2=tr2, trp=trp)
    sig_bf = signal.astype(jnp.bfloat16)

    def wspec(arr):
        nd = arr.ndim
        return pl.BlockSpec(arr.shape, lambda b, _nd=nd: (0,) * _nd)

    p = params
    return pl.pallas_call(
        kernel,
        out_shape=jax.ShapeDtypeStruct((B, N, Cout), jnp.float32),
        grid=(B,),
        in_specs=[pl.BlockSpec((1, N, Cin), lambda b: (b, 0, 0)),
                  pl.BlockSpec((1, NK, 3), lambda b: (b, 0, 0)),
                  pl.BlockSpec((1, NK, 1), lambda b: (b, 0, 0)),
                  wspec(p["w1a"]), wspec(p["w1b"]), wspec(p["b1"]),
                  wspec(p["g1"]), wspec(p["be1"]),
                  wspec(p["w2"]), wspec(p["b2"]), wspec(p["g2"]), wspec(p["be2"]),
                  wspec(p["w3"]), wspec(p["b3"]), wspec(p["g3"]), wspec(p["be3"])],
        out_specs=pl.BlockSpec((1, N, Cout), lambda b: (b, 0, 0)),
        scratch_shapes=[pltpu.VMEM((NK, Cout), jnp.bfloat16)],        # resident z
        compiler_params=pltpu.CompilerParams(
            dimension_semantics=("parallel",),
            vmem_limit_bytes=48 * 1024 * 1024),
    )(sig_bf, edge_flat, idx_flat,
      p["w1a"], p["w1b"], p["b1"], p["g1"], p["be1"],
      p["w2"], p["b2"], p["g2"], p["be2"],
      p["w3"], p["b3"], p["g3"], p["be3"])


# ----------------------------------------------------------------------------
# Kernel 3: Sinkhorn optimal transport + cross reconstruction + flow
#           (ot.sinkhorn + the nb_neigh_cross_recon == 0 branch)
# ----------------------------------------------------------------------------
def _sinkhorn_recon_kernel(scal_ref, f0_ref, f1_ref, p0_ref, p1_ref,
                           flow_ref, recon_ref, kbuf, *, nb_iter, tm):
    eps = scal_ref[0]                                                 # exp(epsilon)+0.03
    gamma = scal_ref[1]                                               # exp(gamma)
    f0 = f0_ref[0]                                                    # (N, C)
    p0 = p0_ref[0]                                                    # (N, 3)
    n = kbuf.shape[0]
    m = kbuf.shape[1]

    f0n = f0 * lax.rsqrt(jnp.sum(f0 * f0, axis=-1, keepdims=True) + 1e-8)
    xx = jnp.sum(p0 * p0, axis=-1, keepdims=True)                     # (N, 1)
    ones13 = jnp.ones((1, 3), jnp.float32)

    # Build K = exp(-(1 - cos_sim)/eps) * support slab-by-slab over M so dist /
    # sim temporaries stay bounded (v7x VMEM); only K itself is kept resident.
    for s in range(m // tm):
        c0 = s * tm
        p1s = p1_ref[0, pl.ds(c0, tm), :]                             # (tm, 3)
        f1s = f1_ref[0, pl.ds(c0, tm), :]                             # (tm, C)
        yy = lax.dot_general(ones13, p1s * p1s, (((1,), (1,)), ((), ())),
                             preferred_element_type=jnp.float32)      # (1, tm)
        xy = lax.dot_general(p0, p1s, (((1,), (1,)), ((), ())),
                             preferred_element_type=jnp.float32)      # (N, tm)
        dist = xx + yy - 2.0 * xy
        f1sn = f1s * lax.rsqrt(jnp.sum(f1s * f1s, axis=-1, keepdims=True) + 1e-8)
        sim = lax.dot_general(f0n, f1sn, (((1,), (1,)), ((), ())),
                              preferred_element_type=jnp.float32)     # (N, tm)
        kbuf[:, pl.ds(c0, tm)] = jnp.where(dist < 100.0,
                                           jnp.exp(-(1.0 - sim) / eps), 0.0)

    kmat = kbuf[...]
    if nb_iter == 0:
        a = jnp.ones((n, 1), jnp.float32)
        b = jnp.ones((m, 1), jnp.float32)
    else:
        power = gamma / (gamma + eps)
        a = jnp.full((n, 1), 1.0 / n, jnp.float32)
        prob1 = jnp.full((n, 1), 1.0 / n, jnp.float32)
        prob2 = jnp.full((m, 1), 1.0 / m, jnp.float32)
        b = prob2
        for _ in range(nb_iter):                                      # static unroll
            kta = lax.dot_general(kmat, a, (((0,), (0,)), ((), ())),
                                  preferred_element_type=jnp.float32)  # (M, 1)
            b = jnp.exp(power * jnp.log(prob2 / (kta + 1e-8)))
            kb = jnp.dot(kmat, b, preferred_element_type=jnp.float32)  # (N, 1)
            a = jnp.exp(power * jnp.log(prob1 / (kb + 1e-8)))

    # transport = a * K * b^T is never materialized; fuse the row-sum and
    # transport @ pc2 numerator into ONE (N, M) x (M, 4) matmul.
    p1 = p1_ref[0]                                                    # (M, 3)
    rhs = jnp.concatenate([b, b * p1], axis=1)                        # (M, 4)
    prod = a * jnp.dot(kmat, rhs, preferred_element_type=jnp.float32)  # (N, 4)
    row_sum = prod[:, 0:1]
    target = prod[:, 1:4] / (row_sum + 1e-8)
    recon_ref[0] = target
    flow_ref[0] = target - p0


def sinkhorn_recon(feats0, feats1, pc0, pc1, scalars, nb_iter):
    B, N, C = feats0.shape
    M = feats1.shape[1]
    tm = _divisor_tile(M, 512, 128)
    kernel = functools.partial(_sinkhorn_recon_kernel, nb_iter=nb_iter, tm=tm)
    flow, recon = pl.pallas_call(
        kernel,
        out_shape=(jax.ShapeDtypeStruct((B, N, 3), jnp.float32),
                   jax.ShapeDtypeStruct((B, N, 3), jnp.float32)),
        grid=(B,),
        in_specs=[pl.BlockSpec(memory_space=pltpu.MemorySpace.SMEM),
                  pl.BlockSpec((1, N, C), lambda b: (b, 0, 0)),
                  pl.BlockSpec((1, M, C), lambda b: (b, 0, 0)),
                  pl.BlockSpec((1, N, 3), lambda b: (b, 0, 0)),
                  pl.BlockSpec((1, M, 3), lambda b: (b, 0, 0))],
        out_specs=(pl.BlockSpec((1, N, 3), lambda b: (b, 0, 0)),
                   pl.BlockSpec((1, N, 3), lambda b: (b, 0, 0))),
        scratch_shapes=[pltpu.VMEM((N, M), jnp.float32)],             # K matrix
        compiler_params=pltpu.CompilerParams(
            dimension_semantics=("parallel",),
            vmem_limit_bytes=48 * 1024 * 1024),
    )(scalars, feats0, feats1, pc0, pc1)
    return flow, recon


# ----------------------------------------------------------------------------
# Glue: graph construction (top-k stays in XLA) and parameter init
# ----------------------------------------------------------------------------
def construct_graph(pc, nb_neighbors):
    """Graph.construct_graph: per-point KNN indices + edge features (rel. xyz)."""
    B, N, _ = pc.shape
    k = min(nb_neighbors, N)
    dist = pairwise_sqdist(pc, pc)                                    # Pallas, (B,N,N)
    _, nn_idx = lax.top_k(-dist, k)                                   # k nearest (incl. self)
    neigh_xyz = jax.vmap(lambda p, i: p[i])(pc, nn_idx)               # (B, N, K, 3), small
    edge_feats = neigh_xyz - pc[:, :, None, :]                        # computed once / cloud
    idx_flat = nn_idx.reshape(B, N * k, 1).astype(jnp.int32)
    edge_flat = edge_feats.reshape(B, N * k, 3).astype(jnp.bfloat16)
    return nn_idx, edge_feats, idx_flat, edge_flat


def init_setconv(key, cin, cout):
    ks = jax.random.split(key, 6)

    def lin(kw, kb, fan_in, fan_out):
        bound = 1.0 / (fan_in ** 0.5)
        w = jax.random.uniform(kw, (fan_in, fan_out), jnp.float32, -bound, bound)
        b = jax.random.uniform(kb, (1, fan_out), jnp.float32, -bound, bound)
        return w, b

    w1, b1 = lin(ks[0], ks[1], cin + 3, cout)
    w2, b2 = lin(ks[2], ks[3], cout, cout)
    w3, b3 = lin(ks[4], ks[5], cout, cout)
    ones = jnp.ones((1, cout), jnp.float32)
    zeros = jnp.zeros((1, cout), jnp.float32)
    # fc1 weight split into signal / edge halves; weights pre-cast to bf16 once
    # here instead of on every grid step inside the kernel.
    return dict(w1a=w1[:cin].astype(jnp.bfloat16),
                w1b=w1[cin:].astype(jnp.bfloat16),
                b1=b1, g1=ones, be1=zeros,
                w2=w2.astype(jnp.bfloat16), b2=b2, g2=ones, be2=zeros,
                w3=w3.astype(jnp.bfloat16), b3=b3, g3=ones, be3=zeros)


# ----------------------------------------------------------------------------
# SCOOP model
# ----------------------------------------------------------------------------
class ScoopPallas:
    def __init__(self, nb_iter, nb_neigh_cross_recon, key):
        n = 32
        self.nb_iter = int(nb_iter)
        self.nb_neigh_cross_recon = int(nb_neigh_cross_recon)
        assert self.nb_neigh_cross_recon == 0, \
            "only the nb_neigh_cross_recon == 0 branch is implemented"
        self.gamma = jnp.zeros((1,), jnp.float32)      # nn.Parameter(zeros(1))
        self.epsilon = jnp.zeros((1,), jnp.float32)    # nn.Parameter(zeros(1))
        k1, k2, k3 = jax.random.split(key, 3)
        self.conv1 = init_setconv(k1, 3, n)            # SetConv(3, 32)
        self.conv2 = init_setconv(k2, n, 2 * n)        # SetConv(32, 64)
        self.conv3 = init_setconv(k3, 2 * n, 4 * n)    # SetConv(64, 128)

    def get_features(self, pc, nb_neighbors=32):
        nn_idx, edge_feats, idx_flat, edge_flat = construct_graph(pc, nb_neighbors)
        x = fused_setconv(pc, idx_flat, edge_flat, self.conv1)
        x = fused_setconv(x, idx_flat, edge_flat, self.conv2)
        x = fused_setconv(x, idx_flat, edge_flat, self.conv3)         # (B, N, 128)
        return x, (nn_idx, edge_feats)

    def __call__(self, pc0, pc1):
        feats0, graph = self.get_features(pc0)
        feats1, _ = self.get_features(pc1)
        scalars = jnp.concatenate([jnp.exp(self.epsilon) + 0.03,
                                   jnp.exp(self.gamma)]).astype(jnp.float32)
        recon_flow, target_cross_recon = sinkhorn_recon(
            feats0, feats1, pc0, pc1, scalars, self.nb_iter)
        corr_conf = None                                              # nb_neigh_cross_recon == 0
        return recon_flow, corr_conf, target_cross_recon, graph


# ----------------------------------------------------------------------------
if __name__ == "__main__":
    key = jax.random.PRNGKey(0)
    k_model, k_pc1, k_pc2 = jax.random.split(key, 3)

    B, N, M = 2, 16, 16
    pc1 = jax.random.uniform(k_pc1, (B, N, 3), jnp.float32)
    pc2 = jax.random.uniform(k_pc2, (B, M, 3), jnp.float32)

    model = ScoopPallas(nb_iter=3, nb_neigh_cross_recon=0, key=k_model)
    recon_flow, corr_conf, target_recon, graph = model(pc1, pc2)

    jax.block_until_ready(recon_flow)
    jax.block_until_ready(target_recon)
    assert recon_flow.shape == (B, N, 3)
    assert target_recon.shape == (B, N, 3)
    assert jnp.all(jnp.isfinite(recon_flow)) and jnp.all(jnp.isfinite(target_recon))
    print("KERNEL_OK")
</pallas_src>

<mosaic_0001>
module attributes {stable_mosaic.version = 11 : i64} {
  func.func @_sqdist_kernel(%arg0: i32, %arg1: i32, %arg2: memref<1x16x3xf32, #tpu.memory_space<vmem>>, %arg3: memref<1x16x3xf32, #tpu.memory_space<vmem>>, %arg4: memref<1x1x16xf32, #tpu.memory_space<vmem>>, %arg5: memref<1x16x16xf32, #tpu.memory_space<vmem>>) attributes {dimension_semantics = [#tpu.dimension_semantics<parallel>, #tpu.dimension_semantics<parallel>], iteration_bounds = array<i64: 2, 1>, scalar_prefetch = 0 : i64, scratch_operands = 0 : i64, tpu.core_type = #tpu.core_type<tc>, window_params = [{transform_indices = @transform_0, window_bounds = array<i64: 1, 16, 3>}, {transform_indices = @transform_1, window_bounds = array<i64: 1, 16, 3>}, {transform_indices = @transform_2, window_bounds = array<i64: 1, 1, 16>}, {transform_indices = @transform_3, window_bounds = array<i64: 1, 16, 16>}]} {
    %c0 = arith.constant 0 : index
    %c0_0 = arith.constant 0 : index
    %c0_1 = arith.constant 0 : index
    %0 = vector.load %arg2[%c0, %c0_0, %c0_1] : memref<1x16x3xf32, #tpu.memory_space<vmem>>, vector<1x16x3xf32>
    %1 = vector.shape_cast %0 : vector<1x16x3xf32> to vector<16x3xf32>
    %c0_2 = arith.constant 0 : index
    %c0_3 = arith.constant 0 : index
    %c0_4 = arith.constant 0 : index
    %2 = vector.load %arg3[%c0_2, %c0_3, %c0_4] : memref<1x16x3xf32, #tpu.memory_space<vmem>>, vector<1x16x3xf32>
    %3 = vector.shape_cast %2 : vector<1x16x3xf32> to vector<16x3xf32>
    %4 = arith.mulf %1, %1 : vector<16x3xf32>
    %cst = arith.constant dense<0.000000e+00> : vector<16xf32>
    %5 = vector.multi_reduction <add>, %4, %cst [1] : vector<16x3xf32> to vector<16xf32>
    %6 = vector.shape_cast %5 : vector<16xf32> to vector<16x1xf32>
    %cst_5 = arith.constant dense<0.000000e+00> : vector<16x16xf32>
    %7 = tpu.matmul %1, %3, %cst_5 {dimension_numbers = #tpu.dot_dimension_numbers<[1], [1], [0], [0], [0, 0, 1, 0], [], []>} : vector<16x3xf32>, vector<16x3xf32>, vector<16x16xf32> -> vector<16x16xf32>
    %c0_6 = arith.constant 0 : index
    %c0_7 = arith.constant 0 : index
    %c0_8 = arith.constant 0 : index
    %8 = vector.load %arg4[%c0_6, %c0_7, %c0_8] : memref<1x1x16xf32, #tpu.memory_space<vmem>>, vector<1x1x16xf32>
    %9 = vector.shape_cast %8 : vector<1x1x16xf32> to vector<1x16xf32>
    %10 = vector.broadcast %6 : vector<16x1xf32> to vector<16x16xf32>
    %11 = vector.broadcast %9 : vector<1x16xf32> to vector<16x16xf32>
    %12 = arith.addf %10, %11 : vector<16x16xf32>
    %cst_9 = arith.constant 2.000000e+00 : f32
    %13 = vector.broadcast %cst_9 : f32 to vector<16x16xf32>
    %14 = arith.mulf %13, %7 : vector<16x16xf32>
    %15 = arith.subf %12, %14 : vector<16x16xf32>
    %c0_10 = arith.constant 0 : index
    %c0_11 = arith.constant 0 : index
    %c0_12 = arith.constant 0 : index
    %16 = vector.load %arg5[%c0_10, %c0_11, %c0_12] : memref<1x16x16xf32, #tpu.memory_space<vmem>>, vector<1x16x16xf32>
    %17 = vector.shape_cast %16 : vector<1x16x16xf32> to vector<16x16xf32>
    %18 = vector.shape_cast %15 : vector<16x16xf32> to vector<1x16x16xf32>
    tpu.vector_store %arg5[%c0_10, %c0_11, %c0_12], %18 {strides = array<i32>} : memref<1x16x16xf32, #tpu.memory_space<vmem>>, vector<1x16x16xf32>,
    return
  }
  func.func @transform_0(%arg0: i32, %arg1: i32) -> (i32, i32, i32) {
    %c0_i32 = arith.constant 0 : i32
    %c0_i32_0 = arith.constant 0 : i32
    return %arg0, %arg1, %c0_i32 : i32, i32, i32
  }
  func.func @transform_1(%arg0: i32, %arg1: i32) -> (i32, i32, i32) {
    %c0_i32 = arith.constant 0 : i32
    %c0_i32_0 = arith.constant 0 : i32
    %c0_i32_1 = arith.constant 0 : i32
    return %arg0, %c0_i32, %c0_i32_0 : i32, i32, i32
  }
  func.func @transform_2(%arg0: i32, %arg1: i32) -> (i32, i32, i32) {
    %c0_i32 = arith.constant 0 : i32
    %c0_i32_0 = arith.constant 0 : i32
    %c0_i32_1 = arith.constant 0 : i32
    return %arg0, %c0_i32, %c0_i32_0 : i32, i32, i32
  }
  func.func @transform_3(%arg0: i32, %arg1: i32) -> (i32, i32, i32) {
    %c0_i32 = arith.constant 0 : i32
    %c0_i32_0 = arith.constant 0 : i32
    return %arg0, %arg1, %c0_i32 : i32, i32, i32
  }
}

</mosaic_0001>

<llo_original>
// kernel: tpu_custom_call.1
$region0: #{tpu_custom_call.1}
  #allocation0 [shape = 'u32[]', space=smem, size = 0x4, offset = 0x4, fixed_abs, tag = 'smem constant byte address 0x4 - core index']
  #allocation1 [shape = 'u32[144,128]{1,0:T(1,128)}', space=vmem, size = 0x12000, scoped, tag = 'internal scratch']
  %s0 = inlined_call_operand.vmem [shape: f32[2,16,3], index: 0, kind: input, shape index: {}]
  %s1 = inlined_call_operand.vmem [shape: f32[2,16,3], index: 1, kind: input, shape index: {}]
  %s2 = inlined_call_operand.vmem [shape: f32[2,1,16], index: 2, kind: input, shape index: {}]
  %s3 = inlined_call_operand.hbm [shape: f32[2,16,16], index: 3, kind: output, shape index: {}]
  %s4 = sld [smem:[#allocation0]]
  $region45: #{tpu_custom_call.1} parent=0
    _
  %s6 = ssub.s32 1, %s4
  %s7 = scalar_select 0, %s6, %s4
  $region1: #{tpu_custom_call.1} parent=0
    #allocation2 [shape = 'u8[16384]{0}', space=vmem, size = 0x4000, scoped, tag = 'output window, operand 0']
    #allocation3 [shape = 's32[2]{0}', space=sflag, size = 0x8, scoped, tag = 'scoped memory for tpu_custom_call.1']
    %8 = vsyncpa [#allocation3], 0
    %s9 = scalar_lea.sflag [#allocation3], 1
    %10 = vsyncpa %s9, 0
    loop: start=0, step=1, limit=4
    $region2: #{tpu_custom_call.1} parent=1 // loop_pre_header
      _
    $region3: #{tpu_custom_call.1} parent=1 // loop_header
      %s12 = sphi 0, %s16
      %p13 = scmp.ge.s32.totalorder %s12, 4
      %s19 = sphi 0, %s31
      %s20 = sphi 0, %s27
      %s21 = sphi 0, %s19
      %s22 = sphi 0, %s20
      %s23 = sphi 0, %s21
      %s24 = sphi 0, %s22
      %s36 = sphi 0, %s38
      %s39 = sphi 0, %s36
      %s40 = sphi 0, %s39
      %s56 = sphi 0, %s40
      %s62 = sphi 0, %s64
      %s65 = sphi 0, %s62
      %s66 = sphi 0, %s65
      %s82 = sphi 0, %s66
      %s88 = sphi 0, %s90
      %s91 = sphi 0, %s88
      %s92 = sphi 0, %s91
      %s108 = sphi 0, %s92
      %s116 = sphi 0, %s118
      %s119 = sphi 0, %s116
      %s120 = sphi 0, %s119
      %s136 = sphi 0, %s120
    $region4: #{tpu_custom_call.1} parent=1 // loop_header_branch
      %15 = sbr.rel (%p13) target = $region8
    $region5: #{tpu_custom_call.1} parent=1 // loop_body
      %s17 = ssub.s32 %s12, 1
      %s18 = ssub.s32 %s12, 2
      %s25 = sadd.s32 1, %s20
      %p26 = scmp.ge.s32.totalorder %s25, 1
      %s27 = scalar_select %p26, 0, %s25
      %s28 = sadd.s32 1, %s19
      %s29 = scalar_select %p26, %s28, %s19
      %p30 = scmp.ge.s32.totalorder %s29, 2
      %s31 = scalar_select %p30, 0, %s29
      %s32 = ssub.s32 %s19, %s31
      %s33 = ssub.s32 %s20, %s27
      %s34 = sor.u32 %s32, %s33
      %p35 = scmp.eq.s32.totalorder %s34, 0
      %s37 = sadd.s32 %s36, 1
      %s38 = scalar_select %p35, %s36, %s37
      %p41 = pneg %p35
      %p42 = scmp.eq.s32.totalorder %s12, 1
      %p43 = por %p41, %p42
      %p44 = scmp.ne.s32.totalorder %s36, %s39
      %p45 = scmp.eq.s32.totalorder %s12, 0
      %p46 = por %p44, %p45
      %p47 = scmp.ne.s32.totalorder %s36, %s39
      %p48 = scmp.eq.s32.totalorder %s17, 1
      %p49 = por %p47, %p48
      %p50 = scmp.ne.s32.totalorder %s39, %s40
      %p51 = scmp.eq.s32.totalorder %s17, 0
      %p52 = por %p50, %p51
      %p53 = scmp.ne.s32.totalorder %s39, %s40
      %p54 = scmp.eq.s32.totalorder %s18, 1
      %p55 = por %p53, %p54
      %p57 = scmp.ne.s32.totalorder %s40, %s56
      %p58 = scmp.eq.s32.totalorder %s18, 0
      %p59 = por %p57, %p58
      %s60 = ssub.s32 %s19, %s31
      %p61 = scmp.eq.s32.totalorder %s60, 0
      %s63 = sadd.s32 %s62, 1
      %s64 = scalar_select %p61, %s62, %s63
      %p67 = pneg %p61
      %p68 = scmp.eq.s32.totalorder %s12, 1
      %p69 = por %p67, %p68
      %p70 = scmp.ne.s32.totalorder %s62, %s65
      %p71 = scmp.eq.s32.totalorder %s12, 0
      %p72 = por %p70, %p71
      %p73 = scmp.ne.s32.totalorder %s62, %s65
      %p74 = scmp.eq.s32.totalorder %s17, 1
      %p75 = por %p73, %p74
      %p76 = scmp.ne.s32.totalorder %s65, %s66
      %p77 = scmp.eq.s32.totalorder %s17, 0
      %p78 = por %p76, %p77
      %p79 = scmp.ne.s32.totalorder %s65, %s66
      %p80 = scmp.eq.s32.totalorder %s18, 1
      %p81 = por %p79, %p80
      %p83 = scmp.ne.s32.totalorder %s66, %s82
      %p84 = scmp.eq.s32.totalorder %s18, 0
      %p85 = por %p83, %p84
      %s86 = ssub.s32 %s19, %s31
      %p87 = scmp.eq.s32.totalorder %s86, 0
      %s89 = sadd.s32 %s88, 1
      %s90 = scalar_select %p87, %s88, %s89
      %p93 = pneg %p87
      %p94 = scmp.eq.s32.totalorder %s12, 1
      %p95 = por %p93, %p94
      %p96 = scmp.ne.s32.totalorder %s88, %s91
      %p97 = scmp.eq.s32.totalorder %s12, 0
      %p98 = por %p96, %p97
      %p99 = scmp.ne.s32.totalorder %s88, %s91
      %p100 = scmp.eq.s32.totalorder %s17, 1
      %p101 = por %p99, %p100
      %p102 = scmp.ne.s32.totalorder %s91, %s92
      %p103 = scmp.eq.s32.totalorder %s17, 0
      %p104 = por %p102, %p103
      %p105 = scmp.ne.s32.totalorder %s91, %s92
      %p106 = scmp.eq.s32.totalorder %s18, 1
      %p107 = por %p105, %p106
      %p109 = scmp.ne.s32.totalorder %s92, %s108
      %p110 = scmp.eq.s32.totalorder %s18, 0
      %p111 = por %p109, %p110
      %s112 = ssub.s32 %s19, %s31
      %s113 = ssub.s32 %s20, %s27
      %s114 = sor.u32 %s112, %s113
      %p115 = scmp.eq.s32.totalorder %s114, 0
      %s117 = sadd.s32 %s116, 1
      %s118 = scalar_select %p115, %s116, %s117
      %p121 = pneg %p115
      %p122 = scmp.eq.s32.totalorder %s12, 1
      %p123 = por %p121, %p122
      %p124 = scmp.ne.s32.totalorder %s116, %s119
      %p125 = scmp.eq.s32.totalorder %s12, 0
      %p126 = por %p124, %p125
      %p127 = scmp.ne.s32.totalorder %s116, %s119
      %p128 = scmp.eq.s32.totalorder %s17, 1
      %p129 = por %p127, %p128
      %p130 = scmp.ne.s32.totalorder %s119, %s120
      %p131 = scmp.eq.s32.totalorder %s17, 0
      %p132 = por %p130, %p131
      %p133 = scmp.ne.s32.totalorder %s119, %s120
      %p134 = scmp.eq.s32.totalorder %s18, 1
      %p135 = por %p133, %p134
      %p137 = scmp.ne.s32.totalorder %s120, %s136
      %p138 = scmp.eq.s32.totalorder %s18, 0
      %p139 = por %p137, %p138
      %p140 = scmp.le.s32.totalorder 1, %s12
      %p141 = scmp.lt.s32.totalorder %s12, 3
      %p142 = pnand %p140, %p141
      %p143 = pneg %p142
      // Predicated region
      $region9: #{tpu_custom_call.1} parent=5 // pred_check
        _
      $region10: #{tpu_custom_call.1} parent=5 // pred_check_branch
        %145 = sbr.rel (%p142) target = $region12
      $region11: #{tpu_custom_call.1} parent=5 // pred_region
        %s146 = ssub.s32 %s12, 1
      $region12: #{tpu_custom_call.1} parent=5 // pred_fallthru
        _
      %p147 = scmp.lt.s32.totalorder %s12, 2
      // Predicated region
      $region13: #{tpu_custom_call.1} parent=5 // pred_check
        %p148 = pneg %p147
      $region14: #{tpu_custom_call.1} parent=5 // pred_check_branch
        %150 = sbr.rel (%p148) target = $region16
      $region15: #{tpu_custom_call.1} parent=5 // pred_region
        // Predicated region
        $region17: #{tpu_custom_call.1} parent=15 // pred_check
          %p151 = pneg %p46
        $region18: #{tpu_custom_call.1} parent=15 // pred_check_branch
          %153 = sbr.rel (%p151) target = $region20
        $region19: #{tpu_custom_call.1} parent=15 // pred_region
          %s154 = smul.u32 2, %s20
          %p155 = scmp.lt.s32.totalorder %s19, 1
          %s156 = scalar_select %p155, %s19, 1
          %p157 = scmp.lt.s32.totalorder %s154, 1
          %s158 = scalar_select %p157, %s154, 1
          %s159 = smul.addr %s156, 2
          %s160 = sadd.s32 %s158, %s159
          %s161 = smul.addr %s160, 8
          %s162 = scalar_lea.vmem %s0, %s161
          %s163 = smul.u32 2, %s20
        $region20: #{tpu_custom_call.1} parent=15 // pred_fallthru
          _
        // Predicated region
        $region21: #{tpu_custom_call.1} parent=15 // pred_check
          %p164 = pneg %p72
        $region22: #{tpu_custom_call.1} parent=15 // pred_check_branch
          %166 = sbr.rel (%p164) target = $region24
        $region23: #{tpu_custom_call.1} parent=15 // pred_region
          %p167 = scmp.lt.s32.totalorder %s19, 1
          %s168 = scalar_select %p167, %s19, 1
          %s169 = smul.addr %s168, 2
          %s170 = smul.addr %s169, 8
          %s171 = scalar_lea.vmem %s1, %s170
        $region24: #{tpu_custom_call.1} parent=15 // pred_fallthru
          _
        // Predicated region
        $region25: #{tpu_custom_call.1} parent=15 // pred_check
          %p172 = pneg %p98
        $region26: #{tpu_custom_call.1} parent=15 // pred_check_branch
          %174 = sbr.rel (%p172) target = $region28
        $region27: #{tpu_custom_call.1} parent=15 // pred_region
          %p175 = scmp.lt.s32.totalorder %s19, 1
          %s176 = scalar_select %p175, %s19, 1
          %s177 = scalar_lea.vmem %s2, %s176
        $region28: #{tpu_custom_call.1} parent=15 // pred_fallthru
          _
      $region16: #{tpu_custom_call.1} parent=5 // pred_fallthru
        _
      %p178 = scmp.le.s32.totalorder 1, %s12
      %p179 = scmp.lt.s32.totalorder %s12, 3
      %p180 = pnand %p178, %p179
      %p181 = pneg %p180
      // Predicated region
      $region29: #{tpu_custom_call.1} parent=5 // pred_check
        _
      $region30: #{tpu_custom_call.1} parent=5 // pred_check_branch
        %183 = sbr.rel (%p180) target = $region32
      $region31: #{tpu_custom_call.1} parent=5 // pred_region
        %s184 = ssub.s32 %s12, 1
        %s185 = smul.u32 2, %s22
        %p186 = scmp.lt.s32.totalorder %s21, 1
        %s187 = scalar_select %p186, %s21, 1
        %p188 = scmp.lt.s32.totalorder %s185, 1
        %s189 = scalar_select %p188, %s185, 1
        %s190 = smul.addr %s187, 2
        %s191 = sadd.s32 %s189, %s190
        %s192 = smul.addr %s191, 8
        %s193 = scalar_lea.vmem %s0, %s192
        %p194 = pneg %p52
        %p195 = pneg %p49
        %p196 = scmp.lt.s32.totalorder %s21, 1
        %s197 = scalar_select %p196, %s21, 1
        %s198 = smul.addr %s197, 2
        %s199 = smul.addr %s198, 8
        %s200 = scalar_lea.vmem %s1, %s199
        %p201 = pneg %p78
        %p202 = pneg %p75
        %p203 = scmp.lt.s32.totalorder %s21, 1
        %s204 = scalar_select %p203, %s21, 1
        %s205 = scalar_lea.vmem %s2, %s204
        %p206 = pneg %p104
        %p207 = pneg %p101
        %p208 = pneg %p132
        %p209 = pneg %p129
        %s210 = sand.u32 %s119, 1
        %s211 = scalar_lea.sflag [#allocation3], %s210
        %s212 = sand.u32 %s119, 1
        %s213 = smul.addr %s212, 16
        %s214 = scalar_lea.vmem [#allocation2], %s213
        %s215 = smul.u32 2, %s22
        %p216 = scmp.lt.s32.totalorder %s21, 1
        %s217 = scalar_select %p216, %s21, 1
        %p218 = scmp.lt.s32.totalorder %s215, 1
        %s219 = scalar_select %p218, %s215, 1
        %s220 = smul.addr %s217, 2
        %s221 = sadd.s32 %s219, %s220
        %s222 = smul.addr %s221, 8
        %s223 = scalar_lea.vmem %s0, %s222
        %s224 = smul.u32 2, %s22
        %p225 = scmp.lt.s32.totalorder %s21, 1
        %s226 = scalar_select %p225, %s21, 1
        %s227 = smul.addr %s226, 2
        %s228 = smul.addr %s227, 8
        %s229 = scalar_lea.vmem %s1, %s228
        %p230 = scmp.lt.s32.totalorder %s21, 1
        %s231 = scalar_select %p230, %s21, 1
        %s232 = scalar_lea.vmem %s2, %s231
        %s233 = smul.u32 2, %s22
        %v234 = vld [vmem:[%s223] sm:$0xff]
        %v235 = vld [vmem:[%s223 + $0x8] sm:$0xff]
        %v236 = vld [vmem:[%s229] sm:$0xff]
        %v237 = vld [vmem:[%s229 + $0x8] sm:$0xff]
        %v238 = vmul.f32 %v234, %v234
        %v239 = vmul.f32 %v235, %v235
        %vm240 = vcmask 23552
        %v241 = vsel %vm240, %v238, 0.0
        %242 = vadd.xlane.f32.xlu0 %v241
        %v243 = vpop.xlane.xlu0 %242
        %v244 = vsel %vm240, %v239, 0.0
        %245 = vadd.xlane.f32.xlu0 %v244
        %v246 = vpop.xlane.xlu0 %245
        %v248 = vsel %vm240, %v234, 0
        %v251 = vsel %vm240, %v235, 0
        %v254 = vsel %vm240, %v236, 0
        %v257 = vsel %vm240, %v237, 0
        %259 = vmatprep.subr.mxu0 0.0
        %260 = vmatpush1.xpose.msra.mxu0 %v254
        %261 = vmatprep.subr.mxu0 0.0
        %262 = vmatpush1.xpose.msra.mxu0 %v257
        %263 = vmatprep.subr.mxu0 0.0
        %264 = vmatpush1.xpose.msra.mxu0 0.0
        %265 = vmatprep.subr.mxu0 0.0
        %266 = vmatpush1.xpose.msra.mxu0 0.0
        %267 = vmatprep.subr.mxu0 0.0
        %268 = vmatpush1.xpose.msra.mxu0 0.0
        %269 = vmatprep.subr.mxu0 0.0
        %270 = vmatpush1.xpose.msra.mxu0 0.0
        %271 = vmatprep.subr.mxu0 0.0
        %272 = vmatpush1.xpose.msra.mxu0 0.0
        %273 = vmatprep.subr.mxu0 0.0
        %274 = vmatpush1.xpose.msra.mxu0 0.0
        %275 = vmatprep.subr.mxu0 0.0
        %276 = vmatpush1.xpose.msra.mxu0 0.0
        %277 = vmatprep.subr.mxu0 0.0
        %278 = vmatpush1.xpose.msra.mxu0 0.0
        %279 = vmatprep.subr.mxu0 0.0
        %280 = vmatpush1.xpose.msra.mxu0 0.0
        %281 = vmatprep.subr.mxu0 0.0
        %282 = vmatpush1.xpose.msra.mxu0 0.0
        %283 = vmatprep.subr.mxu0 0.0
        %284 = vmatpush1.xpose.msra.mxu0 0.0
        %285 = vmatprep.subr.mxu0 0.0
        %286 = vmatpush1.xpose.msra.mxu0 0.0
        %287 = vmatprep.subr.mxu0 0.0
        %288 = vmatpush1.xpose.msra.mxu0 0.0
        %289 = vmatprep.subr.mxu0 0.0
        %290 = vmatpush1.xpose.msra.mxu0 0.0
        %291 = vmatprep.subr.mxu0 0.0
        %292 = vmatpush1.xpose.msra.mxu0 0.0
        %293 = vmatprep.subr.mxu0 0.0
        %294 = vmatpush1.xpose.msra.mxu0 0.0
        %295 = vmatprep.subr.mxu0 0.0
        %296 = vmatpush1.xpose.msra.mxu0 0.0
        %297 = vmatprep.subr.mxu0 0.0
        %298 = vmatpush1.xpose.msra.mxu0 0.0
        %299 = vmatprep.subr.mxu0 0.0
        %300 = vmatpush1.xpose.msra.mxu0 0.0
        %301 = vmatprep.subr.mxu0 0.0
        %302 = vmatpush1.xpose.msra.mxu0 0.0
        %303 = vmatprep.subr.mxu0 0.0
        %304 = vmatpush1.xpose.msra.mxu0 0.0
        %305 = vmatprep.subr.mxu0 0.0
        %306 = vmatpush1.xpose.msra.mxu0 0.0
        %307 = vmatprep.subr.mxu0 0.0
        %308 = vmatpush1.xpose.msra.mxu0 0.0
        %309 = vmatprep.subr.mxu0 0.0
        %310 = vmatpush1.xpose.msra.mxu0 0.0
        %311 = vmatprep.subr.mxu0 0.0
        %312 = vmatpush1.xpose.msra.mxu0 0.0
        %313 = vmatprep.subr.mxu0 0.0
        %314 = vmatpush1.xpose.msra.mxu0 0.0
        %315 = vmatprep.subr.mxu0 0.0
        %316 = vmatpush1.xpose.msra.mxu0 0.0
        %317 = vmatprep.subr.mxu0 0.0
        %318 = vmatpush1.xpose.msra.mxu0 0.0
        %319 = vmatprep.subr.mxu0 0.0
        %320 = vmatpush1.xpose.msra.mxu0 0.0
        %321 = vmatprep.subr.mxu0 0.0
        %322 = vmatpush1.xpose.msra.mxu0 0.0
        %323 = vmatprep.mubr.f32.mxu0 0.0
        %324 = vmatmul.mubr.f32.gmra.mrb[0].mxu0 %v248
        %v325 = vpop.f32.mrb[0].mxu0
        %v326 = vadd.f32 0.0, %v325
        %v327 = vpop.f32.mrb[0].mxu0
        %328 = vmatprep.mubr.f32.mxu0 0.0
        %329 = vmatmul.mubr.f32.gmra.mrb[0].mxu0 %v251
        %v330 = vpop.f32.mrb[0].mxu0
        %v331 = vadd.f32 0.0, %v330
        %v332 = vpop.f32.mrb[0].mxu0
        %333 = vdwg.mxu0
        %v334 = vld [vmem:[%s232] sm:$0x1]
        %v336 = vlaneseq
        %v337 = vshrl.u32 %v336, 7
        %v338 = vsub.s32 0, %v337
        %v339 = vrot.slane %v334, %v338
        %v341 = vadd.f32 %v243, %v339
        %v342 = vadd.f32 %v246, %v339
        %v343 = vmul.f32 %v326, 2.0
        %v344 = vmul.f32 %v331, 2.0
        %v345 = vsub.f32 %v341, %v343
        %v346 = vsub.f32 %v342, %v344
        %vm347 = vcmask 130048
        %348 = vst.msk [vmem:[%s214] sm:$0xff] %vm347, %v345
        %349 = vst.msk [vmem:[%s214 + $0x8] sm:$0xff] %vm347, %v346
        %s350 = sand.u32 %s119, 1
        %s351 = scalar_lea.sflag [#allocation3], %s350
        %s352 = sand.u32 %s119, 1
        %s353 = smul.addr %s352, 16
        %s354 = scalar_lea.vmem [#allocation2], %s353
        // Predicated region
        $region33: #{tpu_custom_call.1} parent=31 // pred_check
          %p355 = pneg %p129
        $region34: #{tpu_custom_call.1} parent=31 // pred_check_branch
          %357 = sbr.rel (%p355) target = $region36
        $region35: #{tpu_custom_call.1} parent=31 // pred_region
          %s358 = smul.u32 2, %s22
          %s360 = ssub.s32 256, 256
          %361 = vsyncadd %s351, %s360
          %s362 = smul.addr %s21, 2
          %s363 = sadd.s32 %s358, %s362
          %s364 = smul.addr %s363, 128
          %s365 = scalar_lea.hbm %s3, %s364
          %s366 = sshll.u32 %s354, 4
          %s367 = int_to_ptr.vmem [resolvable:$true] %s366
          %372 = dma.vmem_to_hbm [thread:$0]  %s367, 256, %s365, %s351, 128, 128, 8
        $region36: #{tpu_custom_call.1} parent=31 // pred_fallthru
          _
      $region32: #{tpu_custom_call.1} parent=5 // pred_fallthru
        _
      %p373 = scmp.le.s32.totalorder 2, %s12
      // Predicated region
      $region37: #{tpu_custom_call.1} parent=5 // pred_check
        %p374 = pneg %p373
      $region38: #{tpu_custom_call.1} parent=5 // pred_check_branch
        %376 = sbr.rel (%p374) target = $region40
      $region39: #{tpu_custom_call.1} parent=5 // pred_region
        %s377 = ssub.s32 %s12, 2
        // Predicated region
        $region41: #{tpu_custom_call.1} parent=39 // pred_check
          %p378 = pneg %p135
        $region42: #{tpu_custom_call.1} parent=39 // pred_check_branch
          %380 = sbr.rel (%p378) target = $region44
        $region43: #{tpu_custom_call.1} parent=39 // pred_region
          %s381 = sand.u32 %s120, 1
          %s382 = scalar_lea.sflag [#allocation3], %s381
          %s383 = sand.u32 %s120, 1
          %s384 = smul.addr %s383, 16
          %s385 = scalar_lea.vmem [#allocation2], %s384
          %386 = dma.done %s382, 256
        $region44: #{tpu_custom_call.1} parent=39 // pred_fallthru
          _
      $region40: #{tpu_custom_call.1} parent=5 // pred_fallthru
        _
    $region6: #{tpu_custom_call.1} parent=1 // loop_footer
      %s16 = sadd.s32 1, %s12
    $region7: #{tpu_custom_call.1} parent=1 // loop_footer_branch
      %11 = sbr.rel target = $region3
    $region8: #{tpu_custom_call.1} parent=1 // loop_exit
      _
    %387 = vsyncpa [#allocation3], 1
    %s388 = scalar_lea.sflag [#allocation3], 1
    %389 = vsyncpa %s388, 1

</llo_original>
